<compile_context>
chip_gen: v5e
topology: v5e:2x2
jax: 0.10.0
libtpu: 0.0.40
codegen_flags: <defaults>
</compile_context>

<pallas_src>
import functools

import jax
import jax.numpy as jnp
from jax.experimental import pallas as pl
from jax.experimental.pallas import tpu as pltpu


_BYTES_PER_ELEM = 4 + 4 + 1      # f32 input + f32 quantized output + int8 bits output
_BUFFER_FACTOR = 2               # BlockSpec default double buffering
_BLOCK_BUDGET_CAP = 8 << 20      # ~8 MiB of I/O per block: well inside the >85%-of-roofline regime


def _bsq_quantize_kernel(x_ref, q_ref, bits_ref, *, q_scale):
    """Elementwise BSQ quantization on a (TR, TL) block.

    sign(l2norm(x)) == sign(x) (the l2 norm is positive), so the straight-through forward
    value q = sign(x)/sqrt(codebook_dims) and the bits (q > 0) depend only on sign(x); the
    normalization (ssq / rsqrt / multiply) is dead work for this output and is dropped.
    """
    pos = x_ref[...] > 0
    q_ref[...] = jnp.where(pos, jnp.float32(q_scale), jnp.float32(-q_scale)).astype(q_ref.dtype)
    bits_ref[...] = pos.astype(jnp.int8)          # int8: 4x less HBM write traffic than int32


def _largest_divisor_multiple(n, unit, cap):
    """Largest t with t % unit == 0, n % t == 0 and t <= max(cap, unit); None if impossible."""
    if n % unit != 0:
        return None
    cap = max(unit, min(cap, n))
    t = (cap // unit) * unit
    while t >= unit:
        if n % t == 0:
            return t
        t -= unit
    return None


def _vmem_budget_bytes():
    """Per-generation scoped-VMEM budget (v7x: 64 MiB physical; v5e/v6e: 128 MiB)."""
    try:
        cap = int(pltpu.get_tpu_info().vmem_capacity_bytes)
    except Exception:
        cap = 64 << 20                            # conservative default = v7x physical VMEM
    return min(cap * 5 // 8, 96 << 20)            # ~40 MiB on v7x, ~80 MiB on v5e/v6e


def _select_tiling(R, L, vmem_budget):
    """Pick (TR, TL): full sublane packing, lane-dense, ~MiB-scale blocks, >=2 grid steps."""
    block_budget = min(_BLOCK_BUDGET_CAP, vmem_budget // (2 * _BUFFER_FACTOR))
    target_elems = max(block_budget // _BYTES_PER_ELEM, 8 * 128)

    if R <= 4096:
        TR = R                                    # full extent: always a legal block dim
    else:
        TR = (_largest_divisor_multiple(R, 32, 4096)
              or _largest_divisor_multiple(R, 8, 4096)
              or R)

    TL = _largest_divisor_multiple(L, 128, max(target_elems // TR, 128))
    if TL is None:
        # TODO(synk): non-128-aligned flattened extents fall back to a full-row block
        # (masked lane stores); pad upstream if this path ever matters for performance.
        TL = L

    # Keep at least 2 (parallel) grid steps so both v7x TensorCores get work.
    if (R // TR) * (L // TL) < 2:
        if TL % 256 == 0:
            TL //= 2
        elif TR % 16 == 0:
            TR //= 2
    return TR, TL


def bsq_forward(x):
    """BSQ.forward for channel-first (B, C, H, W) input, Identity projections, 1 codebook.

    Returns (quantized, indices, bit_indices, aux_loss) mirroring the module's Return tuple:
      quantized   : (B, C, H, W) float32 (force_quantization_f32 keeps the f32 value)
      indices     : None (the module returns None on this path)
      bit_indices : (B, H, W, C) int32 in {0, 1}
      aux_loss    : scalar 0.0 (entropy/commitment terms are the module's self.zero here)
    """
    B, C, H, W = x.shape
    q_scale = 1.0 / (C ** 0.5)          # codebook_dims == C  (dim == codebook_dims, 1 codebook)

    # The forward value is elementwise in x, so any 2-D factorization of the contiguous NCHW
    # buffer is a free bitcast view.  Put a large axis on lanes and >=8 rows on sublanes.
    R, L = B * C, H * W
    while R < 8 and L % 2 == 0:
        R *= 2
        L //= 2

    vmem_budget = _vmem_budget_bytes()
    TR, TL = _select_tiling(R, L, vmem_budget)
    grid = (R // TR, L // TL)

    x2 = x.reshape(R, L)                # contiguous view -> pure bitcast, no extra HBM pass

    quant2, bits2 = pl.pallas_call(
        functools.partial(_bsq_quantize_kernel, q_scale=q_scale),
        out_shape=(
            jax.ShapeDtypeStruct((R, L), jnp.float32),   # force_quantization_f32 output dtype
            jax.ShapeDtypeStruct((R, L), jnp.int8),
        ),
        grid=grid,
        in_specs=[pl.BlockSpec((TR, TL), lambda r, l: (r, l))],
        out_specs=(
            pl.BlockSpec((TR, TL), lambda r, l: (r, l)),
            pl.BlockSpec((TR, TL), lambda r, l: (r, l)),
        ),
        compiler_params=pltpu.CompilerParams(
            dimension_semantics=("parallel", "parallel"),
            vmem_limit_bytes=int(vmem_budget),
        ),
    )(x2)

    quantized = quant2.reshape(B, C, H, W)               # bitcast back to NCHW
    # Module returns bit_indices channels-last as int32.  Transposing the int8 tensor and
    # widening to int32 fuses into one XLA pass (reads 1 byte/elt instead of 4).
    bit_indices = jnp.transpose(bits2.reshape(B, C, H, W), (0, 2, 3, 1)).astype(jnp.int32)
    aux_loss = jnp.zeros((), dtype=jnp.float32)
    indices = None
    # TODO(synk): has_projections=True (dim != codebook_dims) would need an MXU matmul stage
    #             for project_in/project_out; not implemented here.
    return quantized, indices, bit_indices, aux_loss


if __name__ == "__main__":
    key = jax.random.PRNGKey(0)
    B, C, H, W = 2, 4, 16, 16            # dim == codebook_dims == 4 (codebook_size = 16)
    x = jax.random.normal(key, (B, C, H, W), dtype=jnp.float32)

    quantized, indices, bit_indices, aux_loss = bsq_forward(x)
    quantized = jax.block_until_ready(quantized)
    bit_indices = jax.block_until_ready(bit_indices)

    # pure-JAX reference replicating BSQ.forward (channel_first branch, no projections,
    # num_codebooks=1, new_quant=True, force_quantization_f32=True)
    xr = jnp.transpose(x, (0, 2, 3, 1)).reshape(B, H * W, 1, C).astype(jnp.float32)
    norm = jnp.sqrt(jnp.sum(xr * xr, axis=-1, keepdims=True))
    z_ref = xr / jnp.maximum(norm, 1e-12)                  # F.normalize(dim=-1)
    q_scale = 1.0 / (C ** 0.5)
    zhat = jnp.where(z_ref > 0, q_scale, -q_scale)         # quantize_new forward value
    bits_ref = (zhat > 0).astype(jnp.int32).reshape(B, H, W, C)
    quant_ref = jnp.transpose(zhat.reshape(B, H, W, C), (0, 3, 1, 2)).astype(jnp.float32)

    assert quantized.shape == (B, C, H, W) and quantized.dtype == jnp.float32
    assert bit_indices.shape == (B, H, W, C) and bit_indices.dtype == jnp.int32
    assert indices is None
    assert float(jnp.max(jnp.abs(quantized - quant_ref))) < 1e-6
    assert bool(jnp.all(bit_indices == bits_ref))
    assert float(aux_loss) == 0.0
    print("KERNEL_OK")
</pallas_src>

<mosaic_0001>
module attributes {stable_mosaic.version = 11 : i64} {
  func.func @_bsq_quantize_kernel(%arg0: i32, %arg1: i32, %arg2: memref<8x128xf32, #tpu.memory_space<vmem>>, %arg3: memref<8x128xf32, #tpu.memory_space<vmem>>, %arg4: memref<8x128xi8, #tpu.memory_space<vmem>>) attributes {dimension_semantics = [#tpu.dimension_semantics<parallel>, #tpu.dimension_semantics<parallel>], iteration_bounds = array<i64: 1, 2>, scalar_prefetch = 0 : i64, scratch_operands = 0 : i64, tpu.core_type = #tpu.core_type<tc>, window_params = [{transform_indices = @transform_0, window_bounds = array<i64: 8, 128>}, {transform_indices = @transform_1, window_bounds = array<i64: 8, 128>}, {transform_indices = @transform_2, window_bounds = array<i64: 8, 128>}]} {
    %c0 = arith.constant 0 : index
    %c0_0 = arith.constant 0 : index
    %0 = vector.load %arg2[%c0, %c0_0] : memref<8x128xf32, #tpu.memory_space<vmem>>, vector<8x128xf32>
    %cst = arith.constant 0.000000e+00 : f32
    %1 = vector.broadcast %cst : f32 to vector<8x128xf32>
    %2 = arith.cmpf ogt, %0, %1 : vector<8x128xf32>
    %cst_1 = arith.constant 5.000000e-01 : f32
    %cst_2 = arith.constant -5.000000e-01 : f32
    %3 = vector.broadcast %cst_1 : f32 to vector<8x128xf32>
    %4 = vector.broadcast %cst_2 : f32 to vector<8x128xf32>
    %5 = arith.select %2, %3, %4 : vector<8x128xi1>, vector<8x128xf32>
    %c0_3 = arith.constant 0 : index
    %c0_4 = arith.constant 0 : index
    %6 = vector.load %arg3[%c0_3, %c0_4] : memref<8x128xf32, #tpu.memory_space<vmem>>, vector<8x128xf32>
    tpu.vector_store %arg3[%c0_3, %c0_4], %5 {strides = array<i32>} : memref<8x128xf32, #tpu.memory_space<vmem>>, vector<8x128xf32>,
    %7 = arith.extui %2 : vector<8x128xi1> to vector<8x128xi8>
    %c0_5 = arith.constant 0 : index
    %c0_6 = arith.constant 0 : index
    %8 = vector.load %arg4[%c0_5, %c0_6] : memref<8x128xi8, #tpu.memory_space<vmem>>, vector<8x128xi8>
    tpu.vector_store %arg4[%c0_5, %c0_6], %7 {strides = array<i32>} : memref<8x128xi8, #tpu.memory_space<vmem>>, vector<8x128xi8>,
    return
  }
  func.func @transform_0(%arg0: i32, %arg1: i32) -> (i32, i32) {
    %c0_i32 = arith.constant 0 : i32
    return %arg0, %arg1 : i32, i32
  }
  func.func @transform_1(%arg0: i32, %arg1: i32) -> (i32, i32) {
    %c0_i32 = arith.constant 0 : i32
    return %arg0, %arg1 : i32, i32
  }
  func.func @transform_2(%arg0: i32, %arg1: i32) -> (i32, i32) {
    %c0_i32 = arith.constant 0 : i32
    return %arg0, %arg1 : i32, i32
  }
}

</mosaic_0001>

<llo_original>
// kernel: tpu_custom_call.1
$region0: #{tpu_custom_call.1}
  #allocation0 [shape = 'u32[]', space=smem, size = 0x4, offset = 0x4, fixed_abs, tag = 'smem constant byte address 0x4 - core index']
  #allocation1 [shape = 'u32[72,128]{1,0:T(1,128)}', space=vmem, size = 0x9000, scoped, tag = 'internal scratch']
  %s0 = inlined_call_operand.hbm [shape: f32[8,256], index: 0, kind: input, shape index: {}]
  %s1 = inlined_call_operand.hbm [shape: f32[8,256], index: 1, kind: output, shape index: {0}]
  %s2 = inlined_call_operand.hbm [shape: s8[8,256], index: 2, kind: output, shape index: {1}]
  %3 = xla_tuple %s1, %s2
  %s4 = sld [smem:[#allocation0]]
  $region49: #{tpu_custom_call.1} parent=0
    _
  %s6 = ssub.s32 1, %s4
  %s7 = scalar_select 0, %s6, %s4
  $region1: #{tpu_custom_call.1} parent=0
    #allocation2 [shape = 'u8[8192]{0}', space=vmem, size = 0x2000, scoped, tag = 'input window, operand 0']
    #allocation3 [shape = 's32[2]{0}', space=sflag, size = 0x8, scoped, tag = 'scoped memory for tpu_custom_call.1']
    #allocation4 [shape = 's32[2]{0}', space=sflag, size = 0x8, scoped, tag = 'scoped memory for tpu_custom_call.1']
    #allocation5 [shape = 'u8[8192]{0}', space=vmem, size = 0x2000, scoped, tag = 'output window, operand 0']
    #allocation6 [shape = 'u8[2048]{0}', space=vmem, size = 0x800, scoped, tag = 'output window, operand 1']
    #allocation7 [shape = 's32[2]{0}', space=sflag, size = 0x8, scoped, tag = 'scoped memory for tpu_custom_call.1']
    %8 = vsyncpa [#allocation3], 0
    %s9 = scalar_lea.sflag [#allocation3], 1
    %10 = vsyncpa %s9, 0
    %11 = vsyncpa [#allocation4], 0
    %s12 = scalar_lea.sflag [#allocation4], 1
    %13 = vsyncpa %s12, 0
    %14 = vsyncpa [#allocation7], 0
    %s15 = scalar_lea.sflag [#allocation7], 1
    %16 = vsyncpa %s15, 0
    loop: start=0, step=1, limit=4
    $region2: #{tpu_custom_call.1} parent=1 // loop_pre_header
      _
    $region3: #{tpu_custom_call.1} parent=1 // loop_header
      %s18 = sphi 0, %s22
      %p19 = scmp.ge.s32.totalorder %s18, 4
      %s25 = sphi 0, %s37
      %s26 = sphi 0, %s33
      %s27 = sphi 0, %s25
      %s28 = sphi 0, %s26
      %s29 = sphi 0, %s27
      %s30 = sphi 0, %s28
      %s42 = sphi 0, %s44
      %s45 = sphi 0, %s42
      %s46 = sphi 0, %s45
      %s62 = sphi 0, %s46
      %s70 = sphi 0, %s72
      %s73 = sphi 0, %s70
      %s74 = sphi 0, %s73
      %s90 = sphi 0, %s74
      %s98 = sphi 0, %s100
      %s101 = sphi 0, %s98
      %s102 = sphi 0, %s101
      %s118 = sphi 0, %s102
    $region4: #{tpu_custom_call.1} parent=1 // loop_header_branch
      %21 = sbr.rel (%p19) target = $region8
    $region5: #{tpu_custom_call.1} parent=1 // loop_body
      %s23 = ssub.s32 %s18, 1
      %s24 = ssub.s32 %s18, 2
      %s31 = sadd.s32 1, %s26
      %p32 = scmp.ge.s32.totalorder %s31, 2
      %s33 = scalar_select %p32, 0, %s31
      %s34 = sadd.s32 1, %s25
      %s35 = scalar_select %p32, %s34, %s25
      %p36 = scmp.ge.s32.totalorder %s35, 1
      %s37 = scalar_select %p36, 0, %s35
      %s38 = ssub.s32 %s25, %s37
      %s39 = ssub.s32 %s26, %s33
      %s40 = sor.u32 %s38, %s39
      %p41 = scmp.eq.s32.totalorder %s40, 0
      %s43 = sadd.s32 %s42, 1
      %s44 = scalar_select %p41, %s42, %s43
      %p47 = pneg %p41
      %p48 = scmp.eq.s32.totalorder %s18, 1
      %p49 = por %p47, %p48
      %p50 = scmp.ne.s32.totalorder %s42, %s45
      %p51 = scmp.eq.s32.totalorder %s18, 0
      %p52 = por %p50, %p51
      %p53 = scmp.ne.s32.totalorder %s42, %s45
      %p54 = scmp.eq.s32.totalorder %s23, 1
      %p55 = por %p53, %p54
      %p56 = scmp.ne.s32.totalorder %s45, %s46
      %p57 = scmp.eq.s32.totalorder %s23, 0
      %p58 = por %p56, %p57
      %p59 = scmp.ne.s32.totalorder %s45, %s46
      %p60 = scmp.eq.s32.totalorder %s24, 1
      %p61 = por %p59, %p60
      %p63 = scmp.ne.s32.totalorder %s46, %s62
      %p64 = scmp.eq.s32.totalorder %s24, 0
      %p65 = por %p63, %p64
      %s66 = ssub.s32 %s25, %s37
      %s67 = ssub.s32 %s26, %s33
      %s68 = sor.u32 %s66, %s67
      %p69 = scmp.eq.s32.totalorder %s68, 0
      %s71 = sadd.s32 %s70, 1
      %s72 = scalar_select %p69, %s70, %s71
      %p75 = pneg %p69
      %p76 = scmp.eq.s32.totalorder %s18, 1
      %p77 = por %p75, %p76
      %p78 = scmp.ne.s32.totalorder %s70, %s73
      %p79 = scmp.eq.s32.totalorder %s18, 0
      %p80 = por %p78, %p79
      %p81 = scmp.ne.s32.totalorder %s70, %s73
      %p82 = scmp.eq.s32.totalorder %s23, 1
      %p83 = por %p81, %p82
      %p84 = scmp.ne.s32.totalorder %s73, %s74
      %p85 = scmp.eq.s32.totalorder %s23, 0
      %p86 = por %p84, %p85
      %p87 = scmp.ne.s32.totalorder %s73, %s74
      %p88 = scmp.eq.s32.totalorder %s24, 1
      %p89 = por %p87, %p88
      %p91 = scmp.ne.s32.totalorder %s74, %s90
      %p92 = scmp.eq.s32.totalorder %s24, 0
      %p93 = por %p91, %p92
      %s94 = ssub.s32 %s25, %s37
      %s95 = ssub.s32 %s26, %s33
      %s96 = sor.u32 %s94, %s95
      %p97 = scmp.eq.s32.totalorder %s96, 0
      %s99 = sadd.s32 %s98, 1
      %s100 = scalar_select %p97, %s98, %s99
      %p103 = pneg %p97
      %p104 = scmp.eq.s32.totalorder %s18, 1
      %p105 = por %p103, %p104
      %p106 = scmp.ne.s32.totalorder %s98, %s101
      %p107 = scmp.eq.s32.totalorder %s18, 0
      %p108 = por %p106, %p107
      %p109 = scmp.ne.s32.totalorder %s98, %s101
      %p110 = scmp.eq.s32.totalorder %s23, 1
      %p111 = por %p109, %p110
      %p112 = scmp.ne.s32.totalorder %s101, %s102
      %p113 = scmp.eq.s32.totalorder %s23, 0
      %p114 = por %p112, %p113
      %p115 = scmp.ne.s32.totalorder %s101, %s102
      %p116 = scmp.eq.s32.totalorder %s24, 1
      %p117 = por %p115, %p116
      %p119 = scmp.ne.s32.totalorder %s102, %s118
      %p120 = scmp.eq.s32.totalorder %s24, 0
      %p121 = por %p119, %p120
      %p122 = scmp.le.s32.totalorder 1, %s18
      %p123 = scmp.lt.s32.totalorder %s18, 3
      %p124 = pnand %p122, %p123
      %p125 = pneg %p124
      // Predicated region
      $region9: #{tpu_custom_call.1} parent=5 // pred_check
        _
      $region10: #{tpu_custom_call.1} parent=5 // pred_check_branch
        %127 = sbr.rel (%p124) target = $region12
      $region11: #{tpu_custom_call.1} parent=5 // pred_region
        %s128 = ssub.s32 %s18, 1
      $region12: #{tpu_custom_call.1} parent=5 // pred_fallthru
        _
      %p129 = scmp.lt.s32.totalorder %s18, 2
      // Predicated region
      $region13: #{tpu_custom_call.1} parent=5 // pred_check
        %p130 = pneg %p129
      $region14: #{tpu_custom_call.1} parent=5 // pred_check_branch
        %132 = sbr.rel (%p130) target = $region16
      $region15: #{tpu_custom_call.1} parent=5 // pred_region
        // Predicated region
        $region17: #{tpu_custom_call.1} parent=15 // pred_check
          %p133 = pneg %p52
        $region18: #{tpu_custom_call.1} parent=15 // pred_check_branch
          %135 = sbr.rel (%p133) target = $region20
        $region19: #{tpu_custom_call.1} parent=15 // pred_region
          %s136 = sand.u32 %s42, 1
          %s137 = scalar_lea.sflag [#allocation3], %s136
          %s138 = sand.u32 %s42, 1
          %s139 = smul.addr %s138, 8
          %s140 = scalar_lea.vmem [#allocation2], %s139
          %142 = vsyncadd %s137, 0
          %s143 = smul.addr %s25, 2
          %s144 = sadd.s32 %s26, %s143
          %s145 = smul.addr %s144, 8
          %s146 = scalar_lea.hbm %s0, %s145
          %s148 = sshll.u32 %s146, 4
          %s149 = int_to_ptr.hbm [resolvable:$true] %s148
          %s150 = sshll.u32 %s140, 4
          %s151 = int_to_ptr.vmem [resolvable:$true] %s150
          %153 = dma.hbm_to_vmem [thread:$0]  %s149, 128, %s151, %s137
        $region20: #{tpu_custom_call.1} parent=15 // pred_fallthru
          _
      $region16: #{tpu_custom_call.1} parent=5 // pred_fallthru
        _
      %p154 = scmp.le.s32.totalorder 1, %s18
      %p155 = scmp.lt.s32.totalorder %s18, 3
      %p156 = pnand %p154, %p155
      %p157 = pneg %p156
      // Predicated region
      $region21: #{tpu_custom_call.1} parent=5 // pred_check
        _
      $region22: #{tpu_custom_call.1} parent=5 // pred_check_branch
        %159 = sbr.rel (%p156) target = $region24
      $region23: #{tpu_custom_call.1} parent=5 // pred_region
        %s160 = ssub.s32 %s18, 1
        %s161 = sand.u32 %s45, 1
        %s162 = scalar_lea.sflag [#allocation3], %s161
        %s163 = sand.u32 %s45, 1
        %s164 = smul.addr %s163, 8
        %s165 = scalar_lea.vmem [#allocation2], %s164
        // Predicated region
        $region25: #{tpu_custom_call.1} parent=23 // pred_check
          %p166 = pneg %p58
        $region26: #{tpu_custom_call.1} parent=23 // pred_check_branch
          %168 = sbr.rel (%p166) target = $region28
        $region27: #{tpu_custom_call.1} parent=23 // pred_region
          %170 = dma.done %s162, 128
        $region28: #{tpu_custom_call.1} parent=23 // pred_fallthru
          _
        %s171 = sand.u32 %s45, 1
        %s172 = scalar_lea.sflag [#allocation3], %s171
        %s173 = sand.u32 %s45, 1
        %s174 = smul.addr %s173, 8
        %s175 = scalar_lea.vmem [#allocation2], %s174
        %p176 = pneg %p58
        %p177 = pneg %p55
        %p178 = pneg %p86
        %p179 = pneg %p83
        %s180 = sand.u32 %s73, 1
        %s181 = scalar_lea.sflag [#allocation4], %s180
        %s182 = sand.u32 %s73, 1
        %s183 = smul.addr %s182, 8
        %s184 = scalar_lea.vmem [#allocation5], %s183
        %p185 = pneg %p114
        %p186 = pneg %p111
        %s187 = sand.u32 %s101, 1
        %s188 = scalar_lea.sflag [#allocation7], %s187
        %s189 = sand.u32 %s101, 1
        %s190 = smul.addr %s189, 2
        %s191 = scalar_lea.vmem [#allocation6], %s190
        %v194 = vld [vmem:[%s165] sm:$0xff]
        %vm195 = vcmp.gt.f32.partialorder %v194, 0.0
        %v196 = vsel %vm195, 0.5, -0.5
        %197 = vst [vmem:[%s184] sm:$0xff] %v196
        %vm198 = vmpackc.low %vm195, %vm195
        %v199 = vsel %vm198, 16711935, 0
        %v200 = vsel %vm198, 16711935, 0
        %v201 = vpack.c.b8 %v200, %v199
        %vm202 = vnez %v201
        %v203 = vsel %vm202, 16843009, 0
        %204 = vst [vmem:[%s191] sm:$0x3] %v203
        %s205 = sand.u32 %s73, 1
        %s206 = scalar_lea.sflag [#allocation4], %s205
        %s207 = sand.u32 %s73, 1
        %s208 = smul.addr %s207, 8
        %s209 = scalar_lea.vmem [#allocation5], %s208
        %s210 = sand.u32 %s101, 1
        %s211 = scalar_lea.sflag [#allocation7], %s210
        %s212 = sand.u32 %s101, 1
        %s213 = smul.addr %s212, 2
        %s214 = scalar_lea.vmem [#allocation6], %s213
        // Predicated region
        $region29: #{tpu_custom_call.1} parent=23 // pred_check
          %p215 = pneg %p83
        $region30: #{tpu_custom_call.1} parent=23 // pred_check_branch
          %217 = sbr.rel (%p215) target = $region32
        $region31: #{tpu_custom_call.1} parent=23 // pred_region
          %219 = vsyncadd %s206, 0
          %s220 = smul.addr %s27, 2
          %s221 = sadd.s32 %s28, %s220
          %s222 = smul.addr %s221, 8
          %s223 = scalar_lea.hbm %s1, %s222
          %s225 = sshll.u32 %s209, 4
          %s226 = int_to_ptr.vmem [resolvable:$true] %s225
          %s227 = sshll.u32 %s223, 4
          %s228 = int_to_ptr.hbm [resolvable:$true] %s227
          %230 = dma.vmem_to_hbm [thread:$0]  %s226, 128, %s228, %s206
        $region32: #{tpu_custom_call.1} parent=23 // pred_fallthru
          _
        // Predicated region
        $region33: #{tpu_custom_call.1} parent=23 // pred_check
          %p231 = pneg %p111
        $region34: #{tpu_custom_call.1} parent=23 // pred_check_branch
          %233 = sbr.rel (%p231) target = $region36
        $region35: #{tpu_custom_call.1} parent=23 // pred_region
          %235 = vsyncadd %s211, 0
          %s236 = smul.addr %s27, 2
          %s237 = sadd.s32 %s28, %s236
          %s238 = smul.addr %s237, 2
          %s239 = scalar_lea.hbm %s2, %s238
          %s241 = sshll.u32 %s214, 4
          %s242 = int_to_ptr.vmem [resolvable:$true] %s241
          %s243 = sshll.u32 %s239, 4
          %s244 = int_to_ptr.hbm [resolvable:$true] %s243
          %246 = dma.vmem_to_hbm [thread:$0]  %s242, 32, %s244, %s211
        $region36: #{tpu_custom_call.1} parent=23 // pred_fallthru
          _
      $region24: #{tpu_custom_call.1} parent=5 // pred_fallthru
        _
      %p247 = scmp.le.s32.totalorder 2, %s18
      // Predicated region
      $region37: #{tpu_custom_call.1} parent=5 // pred_check
        %p248 = pneg %p247
      $region38: #{tpu_custom_call.1} parent=5 // pred_check_branch
        %250 = sbr.rel (%p248) target = $region40
      $region39: #{tpu_custom_call.1} parent=5 // pred_region
        %s251 = ssub.s32 %s18, 2
        // Predicated region
        $region41: #{tpu_custom_call.1} parent=39 // pred_check
          %p252 = pneg %p89
        $region42: #{tpu_custom_call.1} parent=39 // pred_check_branch
          %254 = sbr.rel (%p252) target = $region44
        $region43: #{tpu_custom_call.1} parent=39 // pred_region
          %s255 = sand.u32 %s74, 1
          %s256 = scalar_lea.sflag [#allocation4], %s255
          %s257 = sand.u32 %s74, 1
          %s258 = smul.addr %s257, 8
          %s259 = scalar_lea.vmem [#allocation5], %s258
          %261 = dma.done %s256, 128
        $region44: #{tpu_custom_call.1} parent=39 // pred_fallthru
          _
        // Predicated region
        $region45: #{tpu_custom_call.1} parent=39 // pred_check
          %p262 = pneg %p117
        $region46: #{tpu_custom_call.1} parent=39 // pred_check_branch
          %264 = sbr.rel (%p262) target = $region48
        $region47: #{tpu_custom_call.1} parent=39 // pred_region
          %s265 = sand.u32 %s102, 1
          %s266 = scalar_lea.sflag [#allocation7], %s265
          %s267 = sand.u32 %s102, 1
          %s268 = smul.addr %s267, 2
          %s269 = scalar_lea.vmem [#allocation6], %s268
          %271 = dma.done %s266, 32
        $region48: #{tpu_custom_call.1} parent=39 // pred_fallthru
          _
      $region40: #{tpu_custom_call.1} parent=5 // pred_fallthru
        _
    $region6: #{tpu_custom_call.1} parent=1 // loop_footer
      %s22 = sadd.s32 1, %s18
    $region7: #{tpu_custom_call.1} parent=1 // loop_footer_branch
      %17 = sbr.rel target = $region3
    $region8: #{tpu_custom_call.1} parent=1 // loop_exit
      _
    %272 = vsyncpa [#allocation3], 1
    %s273 = scalar_lea.sflag [#allocation3], 1
    %274 = vsyncpa %s273, 1
    %275 = vsyncpa [#allocation4], 1
    %s276 = scalar_lea.sflag [#allocation4], 1
    %277 = vsyncpa %s276, 1
    %278 = vsyncpa [#allocation7], 1
    %s279 = scalar_lea.sflag [#allocation7], 1
    %280 = vsyncpa %s279, 1

</llo_original>
